<compile_context>
chip_gen: v7x
topology: tpu7x:2x2x1
jax: 0.10.0
libtpu: 0.0.40
codegen_flags: <defaults>
</compile_context>

<pallas_src>
import jax
import jax.numpy as jnp
from jax import lax
from jax.experimental import pallas as pl
from jax.experimental.pallas import tpu as pltpu


def _conv_relu_kernel(w_ref, x_ref, b_ref, o_ref):
    # w_ref: (Co, K) bf16   x_ref: (K, tm) bf16   b_ref: (Co, 1) f32
    # o_ref: (Co, tm) f32   -- tm (columns) sits on lanes for both load and store
    acc = jnp.dot(w_ref[...], x_ref[...], preferred_element_type=jnp.float32)
    acc = acc + b_ref[...]                       # broadcast (Co, 1) over lanes
    o_ref[...] = jnp.maximum(acc, 0.0).astype(o_ref.dtype)


def _pick_tile(N, Mn, K, Co, lane=128, tile_budget=8 << 20, tm_cap=32768):
    """Columns per grid step: big enough to amortize ~0.35us/step overhead,
    small enough that the double-buffered tiles fit a modest VMEM budget."""
    bytes_per_col = 2 * K * 2 + 2 * Co * 4       # dbuf bf16 x-tile + dbuf f32 out-tile
    tm = max(lane, min(tm_cap, (tile_budget // bytes_per_col) // lane * lane))
    if tm >= Mn:
        return Mn                                # single block; full dim is always legal
    # keep >= 8 grid steps so v7x's two TensorCores both get work / pipeline warms up
    while N * pl.cdiv(Mn, tm) < 8 and tm >= 2 * lane:
        tm = max(lane, (tm // 2) // lane * lane)
    return tm


def downsampling_conv_block(x, weight, bias, stride=2):
    """x: (N, Ci, D, H, W) f32; weight: (Co, Ci, s, s, s); bias: (Co,). Returns NCDHW f32."""
    s = stride
    N, Ci, D, H, W = x.shape
    Co = weight.shape[0]
    Do, Ho, Wo = D // s, H // s, W // s
    K = Ci * s * s * s
    Mn = Do * Ho * Wo                            # output columns per sample

    # --- glue (single XLA pass): non-overlapping s^3 patches, (N, K, Mn), bf16 ---
    # rows ordered (ci, kd, kh, kw), columns ordered (do, ho, wo): the kernel output
    # then needs only a free reshape afterwards (no transpose).
    xp = x.reshape(N, Ci, Do, s, Ho, s, Wo, s)
    xp = jnp.transpose(xp, (0, 1, 3, 5, 7, 2, 4, 6)).reshape(N, K, Mn)
    xp = xp.astype(jnp.bfloat16)

    wmat = weight.reshape(Co, K).astype(jnp.bfloat16)   # rows match (ci, kd, kh, kw)
    bmat = bias.reshape(Co, 1).astype(jnp.float32)

    tm = _pick_tile(N, Mn, K, Co)
    grid = (N, pl.cdiv(Mn, tm))                  # ragged last block masked by Pallas

    # --- VMEM budget from the real footprint, with a generation-aware cap ---
    need = (2 * K * tm * 2        # patch tiles (bf16, double-buffered)
            + 2 * Co * tm * 4     # output tiles (f32, double-buffered)
            + 2 * Co * K * 2      # resident weight (bf16)
            + 2 * Co * 4)         # resident bias (f32)
    try:
        cap = int(pltpu.get_tpu_info().vmem_capacity_bytes) * 3 // 4   # ~48MiB v7x, ~96MiB v5e/v6e
    except Exception:
        cap = 48 << 20
    vmem_limit = int(min(max(int(need * 1.5), 8 << 20), max(cap, need + (1 << 20))))

    out = pl.pallas_call(
        _conv_relu_kernel,
        out_shape=jax.ShapeDtypeStruct((N, Co, Mn), jnp.float32),
        grid_spec=pltpu.PrefetchScalarGridSpec(
            num_scalar_prefetch=0,
            grid=grid,
            in_specs=[
                pl.BlockSpec((Co, K), lambda n, i: (0, 0)),           # resident weight
                pl.BlockSpec((None, K, tm), lambda n, i: (n, 0, i)),  # lane-dense patch tile
                pl.BlockSpec((Co, 1), lambda n, i: (0, 0)),           # resident bias
            ],
            out_specs=pl.BlockSpec((None, Co, tm), lambda n, i: (n, 0, i)),
        ),
        compiler_params=pltpu.CompilerParams(
            dimension_semantics=("parallel", "parallel"),
            vmem_limit_bytes=vmem_limit,
        ),
    )(wmat, xp, bmat)

    # free reshape: columns are already ordered (do, ho, wo)
    return out.reshape(N, Co, Do, Ho, Wo)


def _reference(x, weight, bias, stride=2):
    # Full-f32 NCDHW conv with kernel=stride, padding=0, then ReLU.
    y = lax.conv_general_dilated(
        x, weight,
        window_strides=(stride, stride, stride),
        padding="VALID",
        dimension_numbers=("NCDHW", "OIDHW", "NCDHW"),
    )
    y = y + bias.reshape(1, -1, 1, 1, 1)
    return jnp.maximum(y, 0.0)


if __name__ == "__main__":
    key = jax.random.PRNGKey(0)
    k1, k2, k3 = jax.random.split(key, 3)

    N, Ci, Co = 2, 4, 8
    D = H = W = 16
    stride = 2

    x = jax.random.normal(k1, (N, Ci, D, H, W), dtype=jnp.float32)
    # Deterministic parameter init (kaiming-uniform-like bound, synthetic)
    fan_in = Ci * stride ** 3
    bound = 1.0 / (fan_in ** 0.5)
    weight = jax.random.uniform(k2, (Co, Ci, stride, stride, stride),
                                dtype=jnp.float32, minval=-bound, maxval=bound)
    bias = jax.random.uniform(k3, (Co,), dtype=jnp.float32,
                              minval=-bound, maxval=bound)

    out = downsampling_conv_block(x, weight, bias, stride=stride)
    out = jax.block_until_ready(out)

    ref = _reference(x, weight, bias, stride=stride)
    assert out.shape == (N, Co, D // stride, H // stride, W // stride)
    # bf16 kernel inputs vs f32 reference -> loosened tolerance
    err = float(jnp.max(jnp.abs(out - ref)))
    assert jnp.allclose(out, ref, atol=5e-2, rtol=5e-2), f"max abs err {err}"

    print("KERNEL_OK")
</pallas_src>

<mosaic_0001>
module attributes {stable_mosaic.version = 11 : i64} {
  func.func @_conv_relu_kernel(%arg0: i32, %arg1: i32, %arg2: memref<8x32xbf16, #tpu.memory_space<vmem>>, %arg3: memref<1x32x512xbf16, #tpu.memory_space<vmem>>, %arg4: memref<8x1xf32, #tpu.memory_space<vmem>>, %arg5: memref<1x8x512xf32, #tpu.memory_space<vmem>>) attributes {dimension_semantics = [#tpu.dimension_semantics<parallel>, #tpu.dimension_semantics<parallel>], iteration_bounds = array<i64: 2, 1>, scalar_prefetch = 0 : i64, scratch_operands = 0 : i64, tpu.core_type = #tpu.core_type<tc>, window_params = [{pipeline_mode = #tpu.pipeline_mode<synchronous>, transform_indices = @transform_0, window_bounds = array<i64: 8, 32>}, {transform_indices = @transform_1, window_bounds = array<i64: 1, 32, 512>}, {pipeline_mode = #tpu.pipeline_mode<synchronous>, transform_indices = @transform_2, window_bounds = array<i64: 8, 1>}, {transform_indices = @transform_3, window_bounds = array<i64: 1, 8, 512>}]} {
    %c0 = arith.constant 0 : index
    %c0_0 = arith.constant 0 : index
    %0 = vector.load %arg2[%c0, %c0_0] : memref<8x32xbf16, #tpu.memory_space<vmem>>, vector<8x32xbf16>
    %c0_1 = arith.constant 0 : index
    %c0_2 = arith.constant 0 : index
    %c0_3 = arith.constant 0 : index
    %1 = vector.load %arg3[%c0_1, %c0_2, %c0_3] : memref<1x32x512xbf16, #tpu.memory_space<vmem>>, vector<1x32x512xbf16>
    %2 = vector.shape_cast %1 : vector<1x32x512xbf16> to vector<32x512xbf16>
    %cst = arith.constant dense<0.000000e+00> : vector<8x512xf32>
    %3 = tpu.matmul %0, %2, %cst {dimension_numbers = #tpu.dot_dimension_numbers<[1], [0], [0], [1], [0, 0, 1, 1], [], []>} : vector<8x32xbf16>, vector<32x512xbf16>, vector<8x512xf32> -> vector<8x512xf32>
    %c0_4 = arith.constant 0 : index
    %c0_5 = arith.constant 0 : index
    %4 = vector.load %arg4[%c0_4, %c0_5] : memref<8x1xf32, #tpu.memory_space<vmem>>, vector<8x1xf32>
    %5 = vector.broadcast %4 : vector<8x1xf32> to vector<8x512xf32>
    %6 = arith.addf %3, %5 : vector<8x512xf32>
    %cst_6 = arith.constant 0.000000e+00 : f32
    %7 = vector.broadcast %cst_6 : f32 to vector<8x512xf32>
    %8 = arith.maximumf %6, %7 : vector<8x512xf32>
    %c0_7 = arith.constant 0 : index
    %c0_8 = arith.constant 0 : index
    %c0_9 = arith.constant 0 : index
    %9 = vector.load %arg5[%c0_7, %c0_8, %c0_9] : memref<1x8x512xf32, #tpu.memory_space<vmem>>, vector<1x8x512xf32>
    %10 = vector.shape_cast %9 : vector<1x8x512xf32> to vector<8x512xf32>
    %11 = vector.shape_cast %8 : vector<8x512xf32> to vector<1x8x512xf32>
    tpu.vector_store %arg5[%c0_7, %c0_8, %c0_9], %11 {strides = array<i32>} : memref<1x8x512xf32, #tpu.memory_space<vmem>>, vector<1x8x512xf32>,
    return
  }
  func.func @transform_0(%arg0: i32, %arg1: i32) -> (i32, i32) {
    %c0_i32 = arith.constant 0 : i32
    %c0_i32_0 = arith.constant 0 : i32
    %c0_i32_1 = arith.constant 0 : i32
    return %c0_i32, %c0_i32_0 : i32, i32
  }
  func.func @transform_1(%arg0: i32, %arg1: i32) -> (i32, i32, i32) {
    %c0_i32 = arith.constant 0 : i32
    %c0_i32_0 = arith.constant 0 : i32
    return %arg0, %c0_i32, %arg1 : i32, i32, i32
  }
  func.func @transform_2(%arg0: i32, %arg1: i32) -> (i32, i32) {
    %c0_i32 = arith.constant 0 : i32
    %c0_i32_0 = arith.constant 0 : i32
    %c0_i32_1 = arith.constant 0 : i32
    return %c0_i32, %c0_i32_0 : i32, i32
  }
  func.func @transform_3(%arg0: i32, %arg1: i32) -> (i32, i32, i32) {
    %c0_i32 = arith.constant 0 : i32
    %c0_i32_0 = arith.constant 0 : i32
    return %arg0, %c0_i32, %arg1 : i32, i32, i32
  }
}

</mosaic_0001>

<llo_original>
// kernel: tpu_custom_call.1
$region0: #{tpu_custom_call.1}
  #allocation0 [shape = 'u32[]', space=smem, size = 0x4, offset = 0x4, fixed_abs, tag = 'smem constant byte address 0x4 - core index']
  #allocation1 [shape = 'u32[144,128]{1,0:T(1,128)}', space=vmem, size = 0x12000, scoped, tag = 'internal scratch']
  %s0 = inlined_call_operand.vmem [shape: bf16[8,32], index: 0, kind: input, shape index: {}]
  %s1 = inlined_call_operand.hbm [shape: bf16[2,32,512], index: 1, kind: input, shape index: {}]
  %s2 = inlined_call_operand.vmem [shape: f32[8,1], index: 2, kind: input, shape index: {}]
  %s3 = inlined_call_operand.hbm [shape: f32[2,8,512], index: 3, kind: output, shape index: {}]
  %s4 = sld [smem:[#allocation0]]
  $region49: #{tpu_custom_call.1} parent=0
    _
  %s6 = ssub.s32 1, %s4
  %s7 = scalar_select 0, %s6, %s4
  $region1: #{tpu_custom_call.1} parent=0
    #allocation2 [shape = 'u8[65536]{0}', space=vmem, size = 0x10000, scoped, tag = 'input window, operand 1']
    #allocation3 [shape = 's32[2]{0}', space=sflag, size = 0x8, scoped, tag = 'scoped memory for tpu_custom_call.1']
    #allocation4 [shape = 's32[2]{0}', space=sflag, size = 0x8, scoped, tag = 'scoped memory for tpu_custom_call.1']
    #allocation5 [shape = 'u8[32768]{0}', space=vmem, size = 0x8000, scoped, tag = 'output window, operand 0']
    %8 = vsyncpa [#allocation3], 0
    %s9 = scalar_lea.sflag [#allocation3], 1
    %10 = vsyncpa %s9, 0
    %11 = vsyncpa [#allocation4], 0
    %s12 = scalar_lea.sflag [#allocation4], 1
    %13 = vsyncpa %s12, 0
    loop: start=0, step=1, limit=4
    $region2: #{tpu_custom_call.1} parent=1 // loop_pre_header
      _
    $region3: #{tpu_custom_call.1} parent=1 // loop_header
      %s15 = sphi 0, %s19
      %p16 = scmp.ge.s32.totalorder %s15, 4
      %s22 = sphi 0, %s34
      %s23 = sphi 0, %s30
      %s24 = sphi 0, %s22
      %s25 = sphi 0, %s23
      %s26 = sphi 0, %s24
      %s27 = sphi 0, %s25
      %s35 = sphi 0, %s35
      %s37 = sphi 0, %s35
      %s38 = sphi 0, %s37
      %s52 = sphi 0, %s38
      %s60 = sphi 0, %s62
      %s63 = sphi 0, %s60
      %s64 = sphi 0, %s63
      %s80 = sphi 0, %s64
      %s84 = sphi 0, %s84
      %s86 = sphi 0, %s84
      %s87 = sphi 0, %s86
      %s101 = sphi 0, %s87
      %s109 = sphi 0, %s111
      %s112 = sphi 0, %s109
      %s113 = sphi 0, %s112
      %s129 = sphi 0, %s113
    $region4: #{tpu_custom_call.1} parent=1 // loop_header_branch
      %18 = sbr.rel (%p16) target = $region8
    $region5: #{tpu_custom_call.1} parent=1 // loop_body
      %s20 = ssub.s32 %s15, 1
      %s21 = ssub.s32 %s15, 2
      %s28 = sadd.s32 1, %s23
      %p29 = scmp.ge.s32.totalorder %s28, 1
      %s30 = scalar_select %p29, 0, %s28
      %s31 = sadd.s32 1, %s22
      %s32 = scalar_select %p29, %s31, %s22
      %p33 = scmp.ge.s32.totalorder %s32, 2
      %s34 = scalar_select %p33, 0, %s32
      %s36 = sadd.s32 %s35, 1
      %p39 = scmp.eq.s32.totalorder %s15, 1
      %p40 = scmp.ne.s32.totalorder %s35, %s37
      %p41 = scmp.eq.s32.totalorder %s15, 0
      %p42 = por %p40, %p41
      %p43 = scmp.ne.s32.totalorder %s35, %s37
      %p44 = scmp.eq.s32.totalorder %s20, 1
      %p45 = por %p43, %p44
      %p46 = scmp.ne.s32.totalorder %s37, %s38
      %p47 = scmp.eq.s32.totalorder %s20, 0
      %p48 = por %p46, %p47
      %p49 = scmp.ne.s32.totalorder %s37, %s38
      %p50 = scmp.eq.s32.totalorder %s21, 1
      %p51 = por %p49, %p50
      %p53 = scmp.ne.s32.totalorder %s38, %s52
      %p54 = scmp.eq.s32.totalorder %s21, 0
      %p55 = por %p53, %p54
      %s56 = ssub.s32 %s22, %s34
      %s57 = ssub.s32 %s23, %s30
      %s58 = sor.u32 %s56, %s57
      %p59 = scmp.eq.s32.totalorder %s58, 0
      %s61 = sadd.s32 %s60, 1
      %s62 = scalar_select %p59, %s60, %s61
      %p65 = pneg %p59
      %p66 = scmp.eq.s32.totalorder %s15, 1
      %p67 = por %p65, %p66
      %p68 = scmp.ne.s32.totalorder %s60, %s63
      %p69 = scmp.eq.s32.totalorder %s15, 0
      %p70 = por %p68, %p69
      %p71 = scmp.ne.s32.totalorder %s60, %s63
      %p72 = scmp.eq.s32.totalorder %s20, 1
      %p73 = por %p71, %p72
      %p74 = scmp.ne.s32.totalorder %s63, %s64
      %p75 = scmp.eq.s32.totalorder %s20, 0
      %p76 = por %p74, %p75
      %p77 = scmp.ne.s32.totalorder %s63, %s64
      %p78 = scmp.eq.s32.totalorder %s21, 1
      %p79 = por %p77, %p78
      %p81 = scmp.ne.s32.totalorder %s64, %s80
      %p82 = scmp.eq.s32.totalorder %s21, 0
      %p83 = por %p81, %p82
      %s85 = sadd.s32 %s84, 1
      %p88 = scmp.eq.s32.totalorder %s15, 1
      %p89 = scmp.ne.s32.totalorder %s84, %s86
      %p90 = scmp.eq.s32.totalorder %s15, 0
      %p91 = por %p89, %p90
      %p92 = scmp.ne.s32.totalorder %s84, %s86
      %p93 = scmp.eq.s32.totalorder %s20, 1
      %p94 = por %p92, %p93
      %p95 = scmp.ne.s32.totalorder %s86, %s87
      %p96 = scmp.eq.s32.totalorder %s20, 0
      %p97 = por %p95, %p96
      %p98 = scmp.ne.s32.totalorder %s86, %s87
      %p99 = scmp.eq.s32.totalorder %s21, 1
      %p100 = por %p98, %p99
      %p102 = scmp.ne.s32.totalorder %s87, %s101
      %p103 = scmp.eq.s32.totalorder %s21, 0
      %p104 = por %p102, %p103
      %s105 = ssub.s32 %s22, %s34
      %s106 = ssub.s32 %s23, %s30
      %s107 = sor.u32 %s105, %s106
      %p108 = scmp.eq.s32.totalorder %s107, 0
      %s110 = sadd.s32 %s109, 1
      %s111 = scalar_select %p108, %s109, %s110
      %p114 = pneg %p108
      %p115 = scmp.eq.s32.totalorder %s15, 1
      %p116 = por %p114, %p115
      %p117 = scmp.ne.s32.totalorder %s109, %s112
      %p118 = scmp.eq.s32.totalorder %s15, 0
      %p119 = por %p117, %p118
      %p120 = scmp.ne.s32.totalorder %s109, %s112
      %p121 = scmp.eq.s32.totalorder %s20, 1
      %p122 = por %p120, %p121
      %p123 = scmp.ne.s32.totalorder %s112, %s113
      %p124 = scmp.eq.s32.totalorder %s20, 0
      %p125 = por %p123, %p124
      %p126 = scmp.ne.s32.totalorder %s112, %s113
      %p127 = scmp.eq.s32.totalorder %s21, 1
      %p128 = por %p126, %p127
      %p130 = scmp.ne.s32.totalorder %s113, %s129
      %p131 = scmp.eq.s32.totalorder %s21, 0
      %p132 = por %p130, %p131
      %p133 = scmp.le.s32.totalorder 1, %s15
      %p134 = scmp.lt.s32.totalorder %s15, 3
      %p135 = pnand %p133, %p134
      %p136 = pneg %p135
      // Predicated region
      $region9: #{tpu_custom_call.1} parent=5 // pred_check
        _
      $region10: #{tpu_custom_call.1} parent=5 // pred_check_branch
        %138 = sbr.rel (%p135) target = $region12
      $region11: #{tpu_custom_call.1} parent=5 // pred_region
        %s139 = ssub.s32 %s15, 1
        // Predicated region
        $region13: #{tpu_custom_call.1} parent=11 // pred_check
          %p140 = pneg %p48
        $region14: #{tpu_custom_call.1} parent=11 // pred_check_branch
          %142 = sbr.rel (%p140) target = $region16
        $region15: #{tpu_custom_call.1} parent=11 // pred_region
          _
        $region16: #{tpu_custom_call.1} parent=11 // pred_fallthru
          _
        // Predicated region
        $region17: #{tpu_custom_call.1} parent=11 // pred_check
          %p143 = pneg %p97
        $region18: #{tpu_custom_call.1} parent=11 // pred_check_branch
          %145 = sbr.rel (%p143) target = $region20
        $region19: #{tpu_custom_call.1} parent=11 // pred_region
          _
        $region20: #{tpu_custom_call.1} parent=11 // pred_fallthru
          _
      $region12: #{tpu_custom_call.1} parent=5 // pred_fallthru
        _
      %p146 = scmp.lt.s32.totalorder %s15, 2
      // Predicated region
      $region21: #{tpu_custom_call.1} parent=5 // pred_check
        %p147 = pneg %p146
      $region22: #{tpu_custom_call.1} parent=5 // pred_check_branch
        %149 = sbr.rel (%p147) target = $region24
      $region23: #{tpu_custom_call.1} parent=5 // pred_region
        // Predicated region
        $region25: #{tpu_custom_call.1} parent=23 // pred_check
          %p150 = pneg %p70
        $region26: #{tpu_custom_call.1} parent=23 // pred_check_branch
          %152 = sbr.rel (%p150) target = $region28
        $region27: #{tpu_custom_call.1} parent=23 // pred_region
          %s153 = sand.u32 %s60, 1
          %s154 = scalar_lea.sflag [#allocation3], %s153
          %s155 = sand.u32 %s60, 1
          %s156 = smul.addr %s155, 64
          %s157 = scalar_lea.vmem [#allocation2], %s156
          %s158 = smul.u32 4, %s23
          %s160 = ssub.s32 1024, 1024
          %161 = vsyncadd %s154, %s160
          %s162 = smul.addr %s22, 16
          %s163 = sadd.s32 %s158, %s162
          %s164 = smul.addr %s163, 64
          %s165 = scalar_lea.hbm %s1, %s164
          %s166 = sshll.u32 %s157, 4
          %s167 = int_to_ptr.vmem [resolvable:$true] %s166
          %172 = dma.hbm_to_vmem [thread:$0]  %s165, 1024, %s167, %s154, 256, 256, 16
        $region28: #{tpu_custom_call.1} parent=23 // pred_fallthru
          _
      $region24: #{tpu_custom_call.1} parent=5 // pred_fallthru
        _
      %p173 = scmp.le.s32.totalorder 1, %s15
      %p174 = scmp.lt.s32.totalorder %s15, 3
      %p175 = pnand %p173, %p174
      %p176 = pneg %p175
      // Predicated region
      $region29: #{tpu_custom_call.1} parent=5 // pred_check
        _
      $region30: #{tpu_custom_call.1} parent=5 // pred_check_branch
        %178 = sbr.rel (%p175) target = $region32
      $region31: #{tpu_custom_call.1} parent=5 // pred_region
        %s179 = ssub.s32 %s15, 1
        %s180 = sand.u32 %s63, 1
        %s181 = scalar_lea.sflag [#allocation3], %s180
        %s182 = sand.u32 %s63, 1
        %s183 = smul.addr %s182, 64
        %s184 = scalar_lea.vmem [#allocation2], %s183
        // Predicated region
        $region33: #{tpu_custom_call.1} parent=31 // pred_check
          %p185 = pneg %p76
        $region34: #{tpu_custom_call.1} parent=31 // pred_check_branch
          %187 = sbr.rel (%p185) target = $region36
        $region35: #{tpu_custom_call.1} parent=31 // pred_region
          %188 = dma.done %s181, 1024
        $region36: #{tpu_custom_call.1} parent=31 // pred_fallthru
          _
        %p189 = pneg %p48
        %p190 = pneg %p45
        %s191 = sand.u32 %s63, 1
        %s192 = scalar_lea.sflag [#allocation3], %s191
        %s193 = sand.u32 %s63, 1
        %s194 = smul.addr %s193, 64
        %s195 = scalar_lea.vmem [#allocation2], %s194
        %p196 = pneg %p76
        %p197 = pneg %p73
        %p198 = pneg %p97
        %p199 = pneg %p94
        %p200 = pneg %p125
        %p201 = pneg %p122
        %s202 = sand.u32 %s112, 1
        %s203 = scalar_lea.sflag [#allocation4], %s202
        %s204 = sand.u32 %s112, 1
        %s205 = smul.addr %s204, 32
        %s206 = scalar_lea.vmem [#allocation5], %s205
        %s207 = smul.u32 4, %s25
        %s208 = smul.u32 4, %s25
        %v210 = vld [vmem:[%s0] sm:$0xf]
        %v211 = vld [vmem:[%s184] sm:$0xff]
        %v212 = vld [vmem:[%s184 + $0x8] sm:$0xff]
        %v213 = vld [vmem:[%s184 + $0x10] sm:$0xff]
        %v214 = vld [vmem:[%s184 + $0x18] sm:$0xff]
        %v215 = vld [vmem:[%s184 + $0x20] sm:$0xff]
        %v216 = vld [vmem:[%s184 + $0x28] sm:$0xff]
        %v217 = vld [vmem:[%s184 + $0x30] sm:$0xff]
        %v218 = vld [vmem:[%s184 + $0x38] sm:$0xff]
        %v219 = vld [vmem:[%s2] sm:$0xff]
        %221 = vset.pattern.permute.xlu0 0
        %222 = vperm.xlu0 %221, %v219
        %v223 = vpop.permute.xlu0 %222
        %v233 = vunpack.c.l.b16 %v211
        %v234 = vunpack.c.h.b16 %v211
        %v235 = vunpack.c.l.b16 %v212
        %v236 = vunpack.c.h.b16 %v212
        %v237 = vunpack.c.l.b16 %v213
        %v238 = vunpack.c.h.b16 %v213
        %v239 = vunpack.c.l.b16 %v214
        %v240 = vunpack.c.h.b16 %v214
        %v241 = vunpack.c.l.b16 %v215
        %v242 = vunpack.c.h.b16 %v215
        %v243 = vunpack.c.l.b16 %v216
        %v244 = vunpack.c.h.b16 %v216
        %v245 = vunpack.c.l.b16 %v217
        %v246 = vunpack.c.h.b16 %v217
        %v247 = vunpack.c.l.b16 %v218
        %v248 = vunpack.c.h.b16 %v218
        %v249 = vpack.c.b16 %v237, %v233
        %v250 = vpack.c.b16 %v238, %v234
        %v251 = vpack.c.b16 %v239, %v235
        %v252 = vpack.c.b16 %v240, %v236
        %v253 = vpack.c.b16 %v245, %v241
        %v254 = vpack.c.b16 %v246, %v242
        %v255 = vpack.c.b16 %v247, %v243
        %v256 = vpack.c.b16 %v248, %v244
        %vm265 = vcmask 261120
        %v267 = vsel %vm265, %v210, 0
        %269 = vmatprep.subr.bf16.mxu0 %v250
        %270 = vmatpush1.bf16.msra.mxu0 %v249
        %271 = vmatprep.subr.bf16.mxu0 %v254
        %272 = vmatpush1.bf16.msra.mxu0 %v253
        %273 = vmatprep.subr.bf16.mxu0 0
        %274 = vmatpush1.bf16.msra.mxu0 0
        %275 = vmatprep.subr.bf16.mxu0 0
        %276 = vmatpush1.bf16.msra.mxu0 0
        %277 = vmatprep.subr.bf16.mxu0 0
        %278 = vmatpush1.bf16.msra.mxu0 0
        %279 = vmatprep.subr.bf16.mxu0 0
        %280 = vmatpush1.bf16.msra.mxu0 0
        %281 = vmatprep.subr.bf16.mxu0 0
        %282 = vmatpush1.bf16.msra.mxu0 0
        %283 = vmatprep.subr.bf16.mxu0 0
        %284 = vmatpush1.bf16.msra.mxu0 0
        %285 = vmatprep.subr.bf16.mxu0 0
        %286 = vmatpush1.bf16.msra.mxu0 0
        %287 = vmatprep.subr.bf16.mxu0 0
        %288 = vmatpush1.bf16.msra.mxu0 0
        %289 = vmatprep.subr.bf16.mxu0 0
        %290 = vmatpush1.bf16.msra.mxu0 0
        %291 = vmatprep.subr.bf16.mxu0 0
        %292 = vmatpush1.bf16.msra.mxu0 0
        %293 = vmatprep.subr.bf16.mxu0 0
        %294 = vmatpush1.bf16.msra.mxu0 0
        %295 = vmatprep.subr.bf16.mxu0 0
        %296 = vmatpush1.bf16.msra.mxu0 0
        %297 = vmatprep.subr.bf16.mxu0 0
        %298 = vmatpush1.bf16.msra.mxu0 0
        %299 = vmatprep.subr.bf16.mxu0 0
        %300 = vmatpush1.bf16.msra.mxu0 0
        %301 = vmatprep.mubr.bf16.mxu0 0
        %302 = vmatmul.mubr.bf16.gmra.mrb[0].mxu0 %v267
        %v303 = vpop.f32.mrb[0].mxu0
        %v304 = vadd.f32 %v223, %v303
        %v305 = vpop.f32.mrb[0].mxu0
        %v306 = vadd.f32 %v223, %v305
        %v307 = vpop.f32.mrb[0].mxu0
        %v308 = vpop.f32.mrb[0].mxu0
        %309 = vdwg.mxu0
        %310 = vmatprep.subr.bf16.mxu0 %v252
        %311 = vmatpush1.bf16.msra.mxu0 %v251
        %312 = vmatprep.subr.bf16.mxu0 %v256
        %313 = vmatpush1.bf16.msra.mxu0 %v255
        %314 = vmatprep.subr.bf16.mxu0 0
        %315 = vmatpush1.bf16.msra.mxu0 0
        %316 = vmatprep.subr.bf16.mxu0 0
        %317 = vmatpush1.bf16.msra.mxu0 0
        %318 = vmatprep.subr.bf16.mxu0 0
        %319 = vmatpush1.bf16.msra.mxu0 0
        %320 = vmatprep.subr.bf16.mxu0 0
        %321 = vmatpush1.bf16.msra.mxu0 0
        %322 = vmatprep.subr.bf16.mxu0 0
        %323 = vmatpush1.bf16.msra.mxu0 0
        %324 = vmatprep.subr.bf16.mxu0 0
        %325 = vmatpush1.bf16.msra.mxu0 0
        %326 = vmatprep.subr.bf16.mxu0 0
        %327 = vmatpush1.bf16.msra.mxu0 0
        %328 = vmatprep.subr.bf16.mxu0 0
        %329 = vmatpush1.bf16.msra.mxu0 0
        %330 = vmatprep.subr.bf16.mxu0 0
        %331 = vmatpush1.bf16.msra.mxu0 0
        %332 = vmatprep.subr.bf16.mxu0 0
        %333 = vmatpush1.bf16.msra.mxu0 0
        %334 = vmatprep.subr.bf16.mxu0 0
        %335 = vmatpush1.bf16.msra.mxu0 0
        %336 = vmatprep.subr.bf16.mxu0 0
        %337 = vmatpush1.bf16.msra.mxu0 0
        %338 = vmatprep.subr.bf16.mxu0 0
        %339 = vmatpush1.bf16.msra.mxu0 0
        %340 = vmatprep.subr.bf16.mxu0 0
        %341 = vmatpush1.bf16.msra.mxu0 0
        %342 = vmatprep.mubr.bf16.mxu0 0
        %343 = vmatmul.mubr.bf16.gmra.mrb[0].mxu0 %v267
        %v344 = vpop.f32.mrb[0].mxu0
        %v345 = vadd.f32 %v223, %v344
        %v346 = vpop.f32.mrb[0].mxu0
        %v347 = vadd.f32 %v223, %v346
        %v348 = vpop.f32.mrb[0].mxu0
        %v349 = vpop.f32.mrb[0].mxu0
        %350 = vdwg.mxu0
        %v351 = vmax.f32 %v304, 0.0
        %v352 = vmax.f32 %v306, 0.0
        %v353 = vmax.f32 %v345, 0.0
        %v354 = vmax.f32 %v347, 0.0
        %355 = vst [vmem:[%s206] sm:$0xff] %v351
        %356 = vst [vmem:[%s206 + $0x8] sm:$0xff] %v352
        %357 = vst [vmem:[%s206 + $0x10] sm:$0xff] %v353
        %358 = vst [vmem:[%s206 + $0x18] sm:$0xff] %v354
        %s359 = sand.u32 %s112, 1
        %s360 = scalar_lea.sflag [#allocation4], %s359
        %s361 = sand.u32 %s112, 1
        %s362 = smul.addr %s361, 32
        %s363 = scalar_lea.vmem [#allocation5], %s362
        // Predicated region
        $region37: #{tpu_custom_call.1} parent=31 // pred_check
          %p364 = pneg %p122
        $region38: #{tpu_custom_call.1} parent=31 // pred_check_branch
          %366 = sbr.rel (%p364) target = $region40
        $region39: #{tpu_custom_call.1} parent=31 // pred_region
          %s367 = smul.u32 4, %s25
          %s369 = ssub.s32 512, 512
          %370 = vsyncadd %s360, %s369
          %s371 = smul.addr %s24, 4
          %s372 = sadd.s32 %s367, %s371
          %s373 = smul.addr %s372, 128
          %s374 = scalar_lea.hbm %s3, %s373
          %s376 = sshll.u32 %s363, 4
          %s377 = int_to_ptr.vmem [resolvable:$true] %s376
          %379 = dma.vmem_to_hbm [thread:$0]  %s377, 512, %s374, %s360
        $region40: #{tpu_custom_call.1} parent=31 // pred_fallthru
          _
      $region32: #{tpu_custom_call.1} parent=5 // pred_fallthru
        _
      %p380 = scmp.le.s32.totalorder 2, %s15
      // Predicated region
      $region41: #{tpu_custom_call.1} parent=5 // pred_check
        %p381 = pneg %p380
      $region42: #{tpu_custom_call.1} parent=5 // pred_check_branch
        %383 = sbr.rel (%p381) target = $region44
      $region43: #{tpu_custom_call.1} parent=5 // pred_region
        %s384 = ssub.s32 %s15, 2
        // Predicated region
        $region45: #{tpu_custom_call.1} parent=43 // pred_check
          %p385 = pneg %p128
        $region46: #{tpu_custom_call.1} parent=43 // pred_check_branch
          %387 = sbr.rel (%p385) target = $region48
        $region47: #{tpu_custom_call.1} parent=43 // pred_region
          %s388 = sand.u32 %s113, 1
          %s389 = scalar_lea.sflag [#allocation4], %s388
          %s390 = sand.u32 %s113, 1
          %s391 = smul.addr %s390, 32
          %s392 = scalar_lea.vmem [#allocation5], %s391
          %393 = dma.done %s389, 512
        $region48: #{tpu_custom_call.1} parent=43 // pred_fallthru
          _
      $region44: #{tpu_custom_call.1} parent=5 // pred_fallthru
        _
    $region6: #{tpu_custom_call.1} parent=1 // loop_footer
      %s19 = sadd.s32 1, %s15
    $region7: #{tpu_custom_call.1} parent=1 // loop_footer_branch
      %14 = sbr.rel target = $region3
    $region8: #{tpu_custom_call.1} parent=1 // loop_exit
      _
    %394 = vsyncpa [#allocation3], 1
    %s395 = scalar_lea.sflag [#allocation3], 1
    %396 = vsyncpa %s395, 1
    %397 = vsyncpa [#allocation4], 1
    %s398 = scalar_lea.sflag [#allocation4], 1
    %399 = vsyncpa %s398, 1

</llo_original>
